<compile_context>
chip_gen: v6e
topology: v6e:2x2x1
jax: 0.10.0
libtpu: 0.0.40
codegen_flags: <defaults>
</compile_context>

<pallas_src>
import jax
import jax.numpy as jnp
from jax.experimental import pallas as pl
from jax.experimental.pallas import tpu as pltpu


def _round_up(x: int, m: int) -> int:
    return (x + m - 1) // m * m


# ---------------------------------------------------------------------------
# Pallas forward: conv1x1 + ReLU -> per-batch avg pool -> Linear
# ---------------------------------------------------------------------------
def netadapter_forward(x_nchw, w1, b1, wfc, bfc, *, tile_n: int = 8):
    """x_nchw: (N, C_in, 7, 7) float32; returns (N, num_classes) float32."""
    N, C_in, H, W = x_nchw.shape
    # Default NetAdapter pool is AvgPool2d(kernel_size=7, stride=1); treating it
    # as a global mean is only valid for a 7x7 feature map (-> 1x1 output).
    assert (H, W) == (7, 7), "default pool (k=7, s=1) requires a 7x7 feature map"
    HW = H * W
    C_feat = w1.shape[0]
    num_classes = wfc.shape[0]

    # ---- padded, lane/sublane-friendly sizes (computed once, in the wrapper) --
    HW_pad = _round_up(HW, 8)                 # per-batch row group, sublane aligned
    C_in_pad = _round_up(C_in, 128)           # lane-dense conv contraction dim
    C_feat_pad = _round_up(C_feat, 128)       # lane-dense hidden / fc contraction
    ncls_pad = _round_up(num_classes, 128)    # lane-dense output -> unmasked stores
    N_pad = _round_up(N, tile_n)
    rows_per_tile = tile_n * HW_pad

    # ---- NCHW -> padded channels-last slab (N_pad*HW_pad, C_in_pad) ----------
    # The transpose fuses into the zero-padding copy we need anyway, so the
    # relayout does not cost an extra HBM round trip of the activations.
    x_rows = jnp.transpose(x_nchw, (0, 2, 3, 1)).reshape(N, HW, C_in)
    x_pad = jnp.zeros((N_pad, HW_pad, C_in_pad), jnp.float32)
    x_pad = x_pad.at[:N, :HW, :C_in].set(x_rows.astype(jnp.float32))
    x2d = x_pad.reshape(N_pad * HW_pad, C_in_pad)

    # ---- zero-padded, pre-transposed parameters (zero pad keeps math exact) --
    w1_t = jnp.zeros((C_in_pad, C_feat_pad), jnp.float32).at[:C_in, :C_feat].set(w1.T)
    b1_p = jnp.zeros((1, C_feat_pad), jnp.float32).at[0, :C_feat].set(b1)
    wfc_t = jnp.zeros((C_feat_pad, ncls_pad), jnp.float32).at[:C_feat, :num_classes].set(wfc.T)
    bfc_p = jnp.zeros((1, ncls_pad), jnp.float32).at[0, :num_classes].set(bfc)

    inv_hw = 1.0 / float(HW)

    # ---- kernel ---------------------------------------------------------------
    def kernel(x_ref, w1_ref, b1_ref, wfc_ref, bfc_ref, o_ref):
        # x_ref:   (tile_n*HW_pad, C_in_pad)  channels-last rows for tile_n batches
        # w1_ref:  (C_in_pad, C_feat_pad)     resident
        # b1_ref:  (1, C_feat_pad)            resident
        # wfc_ref: (C_feat_pad, ncls_pad)     resident
        # bfc_ref: (1, ncls_pad)              resident
        # o_ref:   (tile_n, ncls_pad)         lane-dense output tile

        # features: 1x1 conv over channels == matmul, then ReLU.
        h = jnp.dot(x_ref[...], w1_ref[...], preferred_element_type=jnp.float32)
        h = jnp.maximum(h + b1_ref[...], 0.0)            # (tile_n*HW_pad, C_feat_pad)

        # AvgPool2d(k=7, s=1) on a 7x7 map == mean over all HW positions per
        # (batch, channel).  Tile-aligned reshape (HW_pad % 8 == 0, lanes kept),
        # mask out the padded spatial rows (they hold relu(b1), not pixels),
        # then reduce over the spatial axis.
        h3 = h.reshape(tile_n, HW_pad, C_feat_pad)
        k_idx = jax.lax.broadcasted_iota(jnp.int32, (tile_n, HW_pad, C_feat_pad), 1)
        h3 = jnp.where(k_idx < HW, h3, 0.0)
        pooled = jnp.sum(h3, axis=1) * inv_hw            # (tile_n, C_feat_pad)

        # torch.flatten(x, 1) is a no-op (spatial already 1x1); replaced fc:
        # single unmasked full-lane store per sublane group.
        o_ref[...] = (
            jnp.dot(pooled, wfc_ref[...], preferred_element_type=jnp.float32)
            + bfc_ref[...]
        )

    grid = (N_pad // tile_n,)
    flops = (2 * N * HW * C_in * C_feat          # conv matmul
             + N * HW * C_feat                   # relu / bias
             + 2 * N * C_feat * num_classes)     # fc matmul
    bytes_accessed = 4 * (x2d.size + w1_t.size + b1_p.size + wfc_t.size
                          + bfc_p.size + N_pad * ncls_pad)

    out = pl.pallas_call(
        kernel,
        out_shape=jax.ShapeDtypeStruct((N_pad, ncls_pad), jnp.float32),
        grid_spec=pltpu.PrefetchScalarGridSpec(
            num_scalar_prefetch=0,
            grid=grid,
            in_specs=[
                pl.BlockSpec((rows_per_tile, C_in_pad), lambda i: (i, 0)),   # x tile
                pl.BlockSpec((C_in_pad, C_feat_pad), lambda i: (0, 0)),      # w1 resident
                pl.BlockSpec((1, C_feat_pad), lambda i: (0, 0)),             # b1 resident
                pl.BlockSpec((C_feat_pad, ncls_pad), lambda i: (0, 0)),      # wfc resident
                pl.BlockSpec((1, ncls_pad), lambda i: (0, 0)),               # bfc resident
            ],
            out_specs=pl.BlockSpec((tile_n, ncls_pad), lambda i: (i, 0)),
        ),
        compiler_params=pltpu.CompilerParams(
            dimension_semantics=("parallel",),   # batch tiles are independent
        ),
        cost_estimate=pl.CostEstimate(
            flops=flops, transcendentals=0, bytes_accessed=bytes_accessed),
    )(x2d, w1_t, b1_p, wfc_t, bfc_p)

    # Strip batch/lane padding.
    return out[:N, :num_classes]


# ---------------------------------------------------------------------------
# Pure-JAX reference (mirrors the PyTorch semantics on NCHW)
# ---------------------------------------------------------------------------
def netadapter_reference(x_nchw, w1, b1, wfc, bfc):
    # features: Conv2d(C_in, C_feat, kernel_size=1) + ReLU
    h = jnp.einsum("nchw,fc->nfhw", x_nchw, w1) + b1.reshape(1, -1, 1, 1)
    h = jnp.maximum(h, 0.0)
    # AvgPool2d(kernel_size=7, stride=1) on 7x7 -> (N, C_feat, 1, 1) -> flatten
    pooled = jnp.mean(h, axis=(2, 3))
    # fc: Linear(C_feat, num_classes, bias=True)
    return pooled @ wfc.T + bfc


if __name__ == "__main__":
    N, C_IN, H, W = 16, 4, 7, 7        # 7x7 map so default pool (k=7,s=1) -> 1x1
    C_FEAT = 32                        # in_channels_ of the replaced fc
    NUM_CLASSES = 5

    key = jax.random.PRNGKey(0)
    kx, kw1, kb1, kwf, kbf = jax.random.split(key, 5)

    x = jax.random.normal(kx, (N, C_IN, H, W), dtype=jnp.float32)
    # backbone 1x1 conv params (Conv2d weight squeezed to (C_feat, C_in))
    w1 = jax.random.normal(kw1, (C_FEAT, C_IN), dtype=jnp.float32) * 0.1
    b1 = jax.random.normal(kb1, (C_FEAT,), dtype=jnp.float32) * 0.1
    # replaced fc: Linear(C_FEAT, NUM_CLASSES, bias=True)
    wfc = jax.random.normal(kwf, (NUM_CLASSES, C_FEAT), dtype=jnp.float32) * 0.1
    bfc = jax.random.normal(kbf, (NUM_CLASSES,), dtype=jnp.float32) * 0.1

    out = jax.block_until_ready(netadapter_forward(x, w1, b1, wfc, bfc, tile_n=8))
    ref = jax.block_until_ready(netadapter_reference(x, w1, b1, wfc, bfc))

    assert out.shape == (N, NUM_CLASSES), out.shape
    assert jnp.allclose(out, ref, atol=1e-4, rtol=1e-4), (out, ref)
    print("KERNEL_OK")
</pallas_src>

<mosaic_0001>
module attributes {stable_mosaic.version = 11 : i64} {
  func.func @kernel(%arg0: i32, %arg1: memref<448x128xf32, #tpu.memory_space<vmem>>, %arg2: memref<128x128xf32, #tpu.memory_space<vmem>>, %arg3: memref<1x128xf32, #tpu.memory_space<vmem>>, %arg4: memref<128x128xf32, #tpu.memory_space<vmem>>, %arg5: memref<1x128xf32, #tpu.memory_space<vmem>>, %arg6: memref<8x128xf32, #tpu.memory_space<vmem>>) attributes {dimension_semantics = [#tpu.dimension_semantics<parallel>], iteration_bounds = array<i64: 2>, scalar_prefetch = 0 : i64, scratch_operands = 0 : i64, tpu.core_type = #tpu.core_type<tc>, window_params = [{transform_indices = @transform_0, window_bounds = array<i64: 448, 128>}, {pipeline_mode = #tpu.pipeline_mode<synchronous>, transform_indices = @transform_1, window_bounds = array<i64: 128, 128>}, {pipeline_mode = #tpu.pipeline_mode<synchronous>, transform_indices = @transform_2, window_bounds = array<i64: 1, 128>}, {pipeline_mode = #tpu.pipeline_mode<synchronous>, transform_indices = @transform_3, window_bounds = array<i64: 128, 128>}, {pipeline_mode = #tpu.pipeline_mode<synchronous>, transform_indices = @transform_4, window_bounds = array<i64: 1, 128>}, {transform_indices = @transform_5, window_bounds = array<i64: 8, 128>}]} {
    %c0 = arith.constant 0 : index
    %c0_0 = arith.constant 0 : index
    %0 = vector.load %arg1[%c0, %c0_0] : memref<448x128xf32, #tpu.memory_space<vmem>>, vector<448x128xf32>
    %c0_1 = arith.constant 0 : index
    %c0_2 = arith.constant 0 : index
    %1 = vector.load %arg2[%c0_1, %c0_2] : memref<128x128xf32, #tpu.memory_space<vmem>>, vector<128x128xf32>
    %cst = arith.constant dense<0.000000e+00> : vector<448x128xf32>
    %2 = tpu.matmul %0, %1, %cst {dimension_numbers = #tpu.dot_dimension_numbers<[1], [0], [0], [1], [0, 0, 1, 1], [], []>} : vector<448x128xf32>, vector<128x128xf32>, vector<448x128xf32> -> vector<448x128xf32>
    %c0_3 = arith.constant 0 : index
    %c0_4 = arith.constant 0 : index
    %3 = vector.load %arg3[%c0_3, %c0_4] : memref<1x128xf32, #tpu.memory_space<vmem>>, vector<1x128xf32>
    %4 = vector.broadcast %3 : vector<1x128xf32> to vector<448x128xf32>
    %5 = arith.addf %2, %4 : vector<448x128xf32>
    %cst_5 = arith.constant 0.000000e+00 : f32
    %6 = vector.broadcast %cst_5 : f32 to vector<448x128xf32>
    %7 = arith.maximumf %5, %6 : vector<448x128xf32>
    %8 = vector.shape_cast %7 : vector<448x128xf32> to vector<8x56x128xf32>
    %9 = tpu.iota {dimensions = array<i32: 1>} : vector<8x56x128xi32>
    %c49_i32 = arith.constant 49 : i32
    %10 = vector.broadcast %c49_i32 : i32 to vector<8x56x128xi32>
    %11 = arith.cmpi slt, %9, %10 : vector<8x56x128xi32>
    %cst_6 = arith.constant 0.000000e+00 : f32
    %12 = vector.broadcast %cst_6 : f32 to vector<8x56x128xf32>
    %13 = arith.select %11, %8, %12 : vector<8x56x128xi1>, vector<8x56x128xf32>
    %cst_7 = arith.constant dense<0.000000e+00> : vector<8x128xf32>
    %14 = vector.multi_reduction <add>, %13, %cst_7 [1] : vector<8x56x128xf32> to vector<8x128xf32>
    %cst_8 = arith.constant 0.0204081628 : f32
    %15 = vector.broadcast %cst_8 : f32 to vector<8x128xf32>
    %16 = arith.mulf %14, %15 : vector<8x128xf32>
    %c0_9 = arith.constant 0 : index
    %c0_10 = arith.constant 0 : index
    %17 = vector.load %arg4[%c0_9, %c0_10] : memref<128x128xf32, #tpu.memory_space<vmem>>, vector<128x128xf32>
    %cst_11 = arith.constant dense<0.000000e+00> : vector<8x128xf32>
    %18 = tpu.matmul %16, %17, %cst_11 {dimension_numbers = #tpu.dot_dimension_numbers<[1], [0], [0], [1], [0, 0, 1, 1], [], []>} : vector<8x128xf32>, vector<128x128xf32>, vector<8x128xf32> -> vector<8x128xf32>
    %c0_12 = arith.constant 0 : index
    %c0_13 = arith.constant 0 : index
    %19 = vector.load %arg5[%c0_12, %c0_13] : memref<1x128xf32, #tpu.memory_space<vmem>>, vector<1x128xf32>
    %20 = vector.broadcast %19 : vector<1x128xf32> to vector<8x128xf32>
    %21 = arith.addf %18, %20 : vector<8x128xf32>
    %c0_14 = arith.constant 0 : index
    %c0_15 = arith.constant 0 : index
    %22 = vector.load %arg6[%c0_14, %c0_15] : memref<8x128xf32, #tpu.memory_space<vmem>>, vector<8x128xf32>
    tpu.vector_store %arg6[%c0_14, %c0_15], %21 {strides = array<i32>} : memref<8x128xf32, #tpu.memory_space<vmem>>, vector<8x128xf32>,
    return
  }
  func.func @transform_0(%arg0: i32) -> (i32, i32) {
    %c0_i32 = arith.constant 0 : i32
    %c0_i32_0 = arith.constant 0 : i32
    return %arg0, %c0_i32 : i32, i32
  }
  func.func @transform_1(%arg0: i32) -> (i32, i32) {
    %c0_i32 = arith.constant 0 : i32
    %c0_i32_0 = arith.constant 0 : i32
    %c0_i32_1 = arith.constant 0 : i32
    return %c0_i32, %c0_i32_0 : i32, i32
  }
  func.func @transform_2(%arg0: i32) -> (i32, i32) {
    %c0_i32 = arith.constant 0 : i32
    %c0_i32_0 = arith.constant 0 : i32
    %c0_i32_1 = arith.constant 0 : i32
    return %c0_i32, %c0_i32_0 : i32, i32
  }
  func.func @transform_3(%arg0: i32) -> (i32, i32) {
    %c0_i32 = arith.constant 0 : i32
    %c0_i32_0 = arith.constant 0 : i32
    %c0_i32_1 = arith.constant 0 : i32
    return %c0_i32, %c0_i32_0 : i32, i32
  }
  func.func @transform_4(%arg0: i32) -> (i32, i32) {
    %c0_i32 = arith.constant 0 : i32
    %c0_i32_0 = arith.constant 0 : i32
    %c0_i32_1 = arith.constant 0 : i32
    return %c0_i32, %c0_i32_0 : i32, i32
  }
  func.func @transform_5(%arg0: i32) -> (i32, i32) {
    %c0_i32 = arith.constant 0 : i32
    %c0_i32_0 = arith.constant 0 : i32
    return %arg0, %c0_i32 : i32, i32
  }
}

</mosaic_0001>

<llo_original>
// kernel: tpu_custom_call.1
$region0: #{tpu_custom_call.1}
  #allocation0 [shape = 'u32[]', space=smem, size = 0x4, offset = 0x4, fixed_abs, tag = 'smem constant byte address 0x4 - core index']
  #allocation1 [shape = 'u32[144,128]{1,0:T(1,128)}', space=vmem, size = 0x12000, scoped, tag = 'internal scratch']
  %s0 = inlined_call_operand.hbm [shape: f32[896,128], index: 0, kind: input, shape index: {}]
  %s1 = inlined_call_operand.hbm [shape: f32[128,128], index: 1, kind: input, shape index: {}]
  %s2 = inlined_call_operand.vmem [shape: f32[1,128], index: 2, kind: input, shape index: {}]
  %s3 = inlined_call_operand.hbm [shape: f32[128,128], index: 3, kind: input, shape index: {}]
  %s4 = inlined_call_operand.vmem [shape: f32[1,128], index: 4, kind: input, shape index: {}]
  %s5 = inlined_call_operand.hbm [shape: f32[16,128], index: 5, kind: output, shape index: {}]
  %s6 = sld [smem:[#allocation0]]
  $region65: #{tpu_custom_call.1} parent=0
    _
  %s8 = ssub.s32 1, %s6
  %s9 = scalar_select 0, %s8, %s6
  $region1: #{tpu_custom_call.1} parent=0
    #allocation2 [shape = 'u8[458752]{0}', space=vmem, size = 0x70000, scoped, tag = 'input window, operand 0']
    #allocation3 [shape = 's32[2]{0}', space=sflag, size = 0x8, scoped, tag = 'scoped memory for tpu_custom_call.1']
    #allocation4 [shape = 's32[2]{0}', space=sflag, size = 0x8, scoped, tag = 'scoped memory for tpu_custom_call.1']
    #allocation5 [shape = 'u8[65536]{0}', space=vmem, size = 0x10000, scoped, tag = 'input window, operand 1, single buffered']
    #allocation6 [shape = 's32[1]{0}', space=sflag, size = 0x4, scoped, tag = 'scoped memory for tpu_custom_call.1']
    #allocation7 [shape = 'u8[65536]{0}', space=vmem, size = 0x10000, scoped, tag = 'input window, operand 3, single buffered']
    #allocation8 [shape = 'u8[8192]{0}', space=vmem, size = 0x2000, scoped, tag = 'output window, operand 0']
    %10 = vsyncpa [#allocation3], 0
    %s11 = scalar_lea.sflag [#allocation3], 1
    %12 = vsyncpa %s11, 0
    %13 = vsyncpa [#allocation6], 0
    %14 = vsyncpa [#allocation4], 0
    %s15 = scalar_lea.sflag [#allocation4], 1
    %16 = vsyncpa %s15, 0
    loop: start=0, step=1, limit=4
    $region2: #{tpu_custom_call.1} parent=1 // loop_pre_header
      _
    $region3: #{tpu_custom_call.1} parent=1 // loop_header
      %s18 = sphi 0, %s22
      %p19 = scmp.ge.s32.totalorder %s18, 4
      %s28 = sphi 0, %s30
      %s31 = sphi 0, %s28
      %s32 = sphi 0, %s31
      %s48 = sphi 0, %s32
      %s52 = sphi 0, %s52
      %s54 = sphi 0, %s52
      %s55 = sphi 0, %s54
      %s69 = sphi 0, %s55
      %s73 = sphi 0, %s73
      %s75 = sphi 0, %s73
      %s76 = sphi 0, %s75
      %s90 = sphi 0, %s76
      %s94 = sphi 0, %s94
      %s96 = sphi 0, %s94
      %s97 = sphi 0, %s96
      %s111 = sphi 0, %s97
      %s115 = sphi 0, %s115
      %s117 = sphi 0, %s115
      %s118 = sphi 0, %s117
      %s132 = sphi 0, %s118
      %s138 = sphi 0, %s140
      %s141 = sphi 0, %s138
      %s142 = sphi 0, %s141
      %s158 = sphi 0, %s142
    $region4: #{tpu_custom_call.1} parent=1 // loop_header_branch
      %21 = sbr.rel (%p19) target = $region8
    $region5: #{tpu_custom_call.1} parent=1 // loop_body
      %s23 = ssub.s32 %s18, 1
      %s24 = ssub.s32 %s18, 2
      %s25 = sadd.s32 %s18, 1
      %s26 = ssub.s32 %s18, %s25
      %p27 = scmp.eq.s32.totalorder %s26, 0
      %s29 = sadd.s32 %s28, 1
      %s30 = scalar_select %p27, %s28, %s29
      %p33 = pneg %p27
      %p34 = scmp.eq.s32.totalorder %s18, 1
      %p35 = por %p33, %p34
      %p36 = scmp.ne.s32.totalorder %s28, %s31
      %p37 = scmp.eq.s32.totalorder %s18, 0
      %p38 = por %p36, %p37
      %p39 = scmp.ne.s32.totalorder %s28, %s31
      %p40 = scmp.eq.s32.totalorder %s23, 1
      %p41 = por %p39, %p40
      %p42 = scmp.ne.s32.totalorder %s31, %s32
      %p43 = scmp.eq.s32.totalorder %s23, 0
      %p44 = por %p42, %p43
      %p45 = scmp.ne.s32.totalorder %s31, %s32
      %p46 = scmp.eq.s32.totalorder %s24, 1
      %p47 = por %p45, %p46
      %p49 = scmp.ne.s32.totalorder %s32, %s48
      %p50 = scmp.eq.s32.totalorder %s24, 0
      %p51 = por %p49, %p50
      %s53 = sadd.s32 %s52, 1
      %p56 = scmp.eq.s32.totalorder %s18, 1
      %p57 = scmp.ne.s32.totalorder %s52, %s54
      %p58 = scmp.eq.s32.totalorder %s18, 0
      %p59 = por %p57, %p58
      %p60 = scmp.ne.s32.totalorder %s52, %s54
      %p61 = scmp.eq.s32.totalorder %s23, 1
      %p62 = por %p60, %p61
      %p63 = scmp.ne.s32.totalorder %s54, %s55
      %p64 = scmp.eq.s32.totalorder %s23, 0
      %p65 = por %p63, %p64
      %p66 = scmp.ne.s32.totalorder %s54, %s55
      %p67 = scmp.eq.s32.totalorder %s24, 1
      %p68 = por %p66, %p67
      %p70 = scmp.ne.s32.totalorder %s55, %s69
      %p71 = scmp.eq.s32.totalorder %s24, 0
      %p72 = por %p70, %p71
      %s74 = sadd.s32 %s73, 1
      %p77 = scmp.eq.s32.totalorder %s18, 1
      %p78 = scmp.ne.s32.totalorder %s73, %s75
      %p79 = scmp.eq.s32.totalorder %s18, 0
      %p80 = por %p78, %p79
      %p81 = scmp.ne.s32.totalorder %s73, %s75
      %p82 = scmp.eq.s32.totalorder %s23, 1
      %p83 = por %p81, %p82
      %p84 = scmp.ne.s32.totalorder %s75, %s76
      %p85 = scmp.eq.s32.totalorder %s23, 0
      %p86 = por %p84, %p85
      %p87 = scmp.ne.s32.totalorder %s75, %s76
      %p88 = scmp.eq.s32.totalorder %s24, 1
      %p89 = por %p87, %p88
      %p91 = scmp.ne.s32.totalorder %s76, %s90
      %p92 = scmp.eq.s32.totalorder %s24, 0
      %p93 = por %p91, %p92
      %s95 = sadd.s32 %s94, 1
      %p98 = scmp.eq.s32.totalorder %s18, 1
      %p99 = scmp.ne.s32.totalorder %s94, %s96
      %p100 = scmp.eq.s32.totalorder %s18, 0
      %p101 = por %p99, %p100
      %p102 = scmp.ne.s32.totalorder %s94, %s96
      %p103 = scmp.eq.s32.totalorder %s23, 1
      %p104 = por %p102, %p103
      %p105 = scmp.ne.s32.totalorder %s96, %s97
      %p106 = scmp.eq.s32.totalorder %s23, 0
      %p107 = por %p105, %p106
      %p108 = scmp.ne.s32.totalorder %s96, %s97
      %p109 = scmp.eq.s32.totalorder %s24, 1
      %p110 = por %p108, %p109
      %p112 = scmp.ne.s32.totalorder %s97, %s111
      %p113 = scmp.eq.s32.totalorder %s24, 0
      %p114 = por %p112, %p113
      %s116 = sadd.s32 %s115, 1
      %p119 = scmp.eq.s32.totalorder %s18, 1
      %p120 = scmp.ne.s32.totalorder %s115, %s117
      %p121 = scmp.eq.s32.totalorder %s18, 0
      %p122 = por %p120, %p121
      %p123 = scmp.ne.s32.totalorder %s115, %s117
      %p124 = scmp.eq.s32.totalorder %s23, 1
      %p125 = por %p123, %p124
      %p126 = scmp.ne.s32.totalorder %s117, %s118
      %p127 = scmp.eq.s32.totalorder %s23, 0
      %p128 = por %p126, %p127
      %p129 = scmp.ne.s32.totalorder %s117, %s118
      %p130 = scmp.eq.s32.totalorder %s24, 1
      %p131 = por %p129, %p130
      %p133 = scmp.ne.s32.totalorder %s118, %s132
      %p134 = scmp.eq.s32.totalorder %s24, 0
      %p135 = por %p133, %p134
      %s136 = ssub.s32 %s18, %s25
      %p137 = scmp.eq.s32.totalorder %s136, 0
      %s139 = sadd.s32 %s138, 1
      %s140 = scalar_select %p137, %s138, %s139
      %p143 = pneg %p137
      %p144 = scmp.eq.s32.totalorder %s18, 1
      %p145 = por %p143, %p144
      %p146 = scmp.ne.s32.totalorder %s138, %s141
      %p147 = scmp.eq.s32.totalorder %s18, 0
      %p148 = por %p146, %p147
      %p149 = scmp.ne.s32.totalorder %s138, %s141
      %p150 = scmp.eq.s32.totalorder %s23, 1
      %p151 = por %p149, %p150
      %p152 = scmp.ne.s32.totalorder %s141, %s142
      %p153 = scmp.eq.s32.totalorder %s23, 0
      %p154 = por %p152, %p153
      %p155 = scmp.ne.s32.totalorder %s141, %s142
      %p156 = scmp.eq.s32.totalorder %s24, 1
      %p157 = por %p155, %p156
      %p159 = scmp.ne.s32.totalorder %s142, %s158
      %p160 = scmp.eq.s32.totalorder %s24, 0
      %p161 = por %p159, %p160
      %p162 = scmp.le.s32.totalorder 1, %s18
      %p163 = scmp.lt.s32.totalorder %s18, 3
      %p164 = pnand %p162, %p163
      %p165 = pneg %p164
      // Predicated region
      $region9: #{tpu_custom_call.1} parent=5 // pred_check
        _
      $region10: #{tpu_custom_call.1} parent=5 // pred_check_branch
        %167 = sbr.rel (%p164) target = $region12
      $region11: #{tpu_custom_call.1} parent=5 // pred_region
        %s168 = ssub.s32 %s18, 1
        // Predicated region
        $region13: #{tpu_custom_call.1} parent=11 // pred_check
          %p169 = pneg %p65
        $region14: #{tpu_custom_call.1} parent=11 // pred_check_branch
          %171 = sbr.rel (%p169) target = $region16
        $region15: #{tpu_custom_call.1} parent=11 // pred_region
          %s173 = ssub.s32 2048, 2048
          %174 = vsyncadd [#allocation6], %s173
          %s175 = sshll.u32 [#allocation5], 4
          %s176 = int_to_ptr.vmem [resolvable:$true] %s175
          %181 = dma.hbm_to_vmem [thread:$0]  %s1, 2048, %s176, [#allocation6], 128, 128, 8
        $region16: #{tpu_custom_call.1} parent=11 // pred_fallthru
          _
        // Predicated region
        $region17: #{tpu_custom_call.1} parent=11 // pred_check
          %p182 = pneg %p86
        $region18: #{tpu_custom_call.1} parent=11 // pred_check_branch
          %184 = sbr.rel (%p182) target = $region20
        $region19: #{tpu_custom_call.1} parent=11 // pred_region
          _
        $region20: #{tpu_custom_call.1} parent=11 // pred_fallthru
          _
        // Predicated region
        $region21: #{tpu_custom_call.1} parent=11 // pred_check
          %p185 = pneg %p107
        $region22: #{tpu_custom_call.1} parent=11 // pred_check_branch
          %187 = sbr.rel (%p185) target = $region24
        $region23: #{tpu_custom_call.1} parent=11 // pred_region
          %s189 = ssub.s32 2048, 2048
          %190 = vsyncadd [#allocation6], %s189
          %s191 = sshll.u32 [#allocation7], 4
          %s192 = int_to_ptr.vmem [resolvable:$true] %s191
          %197 = dma.hbm_to_vmem [thread:$0]  %s3, 2048, %s192, [#allocation6], 128, 128, 8
        $region24: #{tpu_custom_call.1} parent=11 // pred_fallthru
          _
        // Predicated region
        $region25: #{tpu_custom_call.1} parent=11 // pred_check
          %p198 = pneg %p128
        $region26: #{tpu_custom_call.1} parent=11 // pred_check_branch
          %200 = sbr.rel (%p198) target = $region28
        $region27: #{tpu_custom_call.1} parent=11 // pred_region
          _
        $region28: #{tpu_custom_call.1} parent=11 // pred_fallthru
          _
      $region12: #{tpu_custom_call.1} parent=5 // pred_fallthru
        _
      %p201 = scmp.lt.s32.totalorder %s18, 2
      // Predicated region
      $region29: #{tpu_custom_call.1} parent=5 // pred_check
        %p202 = pneg %p201
      $region30: #{tpu_custom_call.1} parent=5 // pred_check_branch
        %204 = sbr.rel (%p202) target = $region32
      $region31: #{tpu_custom_call.1} parent=5 // pred_region
        // Predicated region
        $region33: #{tpu_custom_call.1} parent=31 // pred_check
          %p205 = pneg %p38
        $region34: #{tpu_custom_call.1} parent=31 // pred_check_branch
          %207 = sbr.rel (%p205) target = $region36
        $region35: #{tpu_custom_call.1} parent=31 // pred_region
          %s208 = sand.u32 %s28, 1
          %s209 = scalar_lea.sflag [#allocation3], %s208
          %s210 = sand.u32 %s28, 1
          %s211 = smul.addr %s210, 448
          %s212 = scalar_lea.vmem [#allocation2], %s211
          %s213 = smul.u32 56, %s18
          %s215 = ssub.s32 7168, 7168
          %216 = vsyncadd %s209, %s215
          %s217 = smul.addr %s213, 128
          %s218 = scalar_lea.hbm %s0, %s217
          %s219 = sshll.u32 %s212, 4
          %s220 = int_to_ptr.vmem [resolvable:$true] %s219
          %225 = dma.hbm_to_vmem [thread:$0]  %s218, 7168, %s220, %s209, 128, 128, 8
        $region36: #{tpu_custom_call.1} parent=31 // pred_fallthru
          _
      $region32: #{tpu_custom_call.1} parent=5 // pred_fallthru
        _
      %p226 = scmp.le.s32.totalorder 1, %s18
      %p227 = scmp.lt.s32.totalorder %s18, 3
      %p228 = pnand %p226, %p227
      %p229 = pneg %p228
      // Predicated region
      $region37: #{tpu_custom_call.1} parent=5 // pred_check
        _
      $region38: #{tpu_custom_call.1} parent=5 // pred_check_branch
        %231 = sbr.rel (%p228) target = $region40
      $region39: #{tpu_custom_call.1} parent=5 // pred_region
        %s232 = ssub.s32 %s18, 1
        %s233 = sand.u32 %s31, 1
        %s234 = scalar_lea.sflag [#allocation3], %s233
        %s235 = sand.u32 %s31, 1
        %s236 = smul.addr %s235, 448
        %s237 = scalar_lea.vmem [#allocation2], %s236
        // Predicated region
        $region41: #{tpu_custom_call.1} parent=39 // pred_check
          %p238 = pneg %p44
        $region42: #{tpu_custom_call.1} parent=39 // pred_check_branch
          %240 = sbr.rel (%p238) target = $region44
        $region43: #{tpu_custom_call.1} parent=39 // pred_region
          %241 = dma.done %s234, 7168
        $region44: #{tpu_custom_call.1} parent=39 // pred_fallthru
          _
        // Predicated region
        $region45: #{tpu_custom_call.1} parent=39 // pred_check
          %p242 = pneg %p65
        $region46: #{tpu_custom_call.1} parent=39 // pred_check_branch
          %244 = sbr.rel (%p242) target = $region48
        $region47: #{tpu_custom_call.1} parent=39 // pred_region
          %245 = dma.done [#allocation6], 2048
        $region48: #{tpu_custom_call.1} parent=39 // pred_fallthru
          _
        // Predicated region
        $region49: #{tpu_custom_call.1} parent=39 // pred_check
          %p246 = pneg %p107
        $region50: #{tpu_custom_call.1} parent=39 // pred_check_branch
          %248 = sbr.rel (%p246) target = $region52
        $region51: #{tpu_custom_call.1} parent=39 // pred_region
          %249 = dma.done [#allocation6], 2048
        $region52: #{tpu_custom_call.1} parent=39 // pred_fallthru
          _
        %s250 = sand.u32 %s31, 1
        %s251 = scalar_lea.sflag [#allocation3], %s250
        %s252 = sand.u32 %s31, 1
        %s253 = smul.addr %s252, 448
        %s254 = scalar_lea.vmem [#allocation2], %s253
        %p255 = pneg %p44
        %p256 = pneg %p41
        %p257 = pneg %p65
        %p258 = pneg %p62
        %p259 = pneg %p86
        %p260 = pneg %p83
        %p261 = pneg %p107
        %p262 = pneg %p104
        %p263 = pneg %p128
        %p264 = pneg %p125
        %p265 = pneg %p154
        %p266 = pneg %p151
        %s267 = sand.u32 %s141, 1
        %s268 = scalar_lea.sflag [#allocation4], %s267
        %s269 = sand.u32 %s141, 1
        %s270 = smul.addr %s269, 8
        %s271 = scalar_lea.vmem [#allocation8], %s270
        %s272 = smul.u32 56, %s23
        %v273 = vld [vmem:[%s237] sm:$0xff]
        %v274 = vld [vmem:[%s237 + $0x8] sm:$0xff]
        %v275 = vld [vmem:[%s237 + $0x10] sm:$0xff]
        %v276 = vld [vmem:[%s237 + $0x18] sm:$0xff]
        %v277 = vld [vmem:[%s237 + $0x20] sm:$0xff]
        %v278 = vld [vmem:[%s237 + $0x28] sm:$0xff]
        %v279 = vld [vmem:[%s237 + $0x30] sm:$0xff]
        %v280 = vld [vmem:[%s237 + $0x38] sm:$0xff]
        %v281 = vld [vmem:[%s237 + $0x40] sm:$0xff]
        %v282 = vld [vmem:[%s237 + $0x48] sm:$0xff]
        %v283 = vld [vmem:[%s237 + $0x50] sm:$0xff]
        %v284 = vld [vmem:[%s237 + $0x58] sm:$0xff]
        %v285 = vld [vmem:[%s237 + $0x60] sm:$0xff]
        %v286 = vld [vmem:[%s237 + $0x68] sm:$0xff]
        %v287 = vld [vmem:[%s237 + $0x70] sm:$0xff]
        %v288 = vld [vmem:[%s237 + $0x78] sm:$0xff]
        %v289 = vld [vmem:[%s237 + $0x80] sm:$0xff]
        %v290 = vld [vmem:[%s237 + $0x88] sm:$0xff]
        %v291 = vld [vmem:[%s237 + $0x90] sm:$0xff]
        %v292 = vld [vmem:[%s237 + $0x98] sm:$0xff]
        %v293 = vld [vmem:[%s237 + $0xa0] sm:$0xff]
        %v294 = vld [vmem:[%s237 + $0xa8] sm:$0xff]
        %v295 = vld [vmem:[%s237 + $0xb0] sm:$0xff]
        %v296 = vld [vmem:[%s237 + $0xb8] sm:$0xff]
        %v297 = vld [vmem:[%s237 + $0xc0] sm:$0xff]
        %v298 = vld [vmem:[%s237 + $0xc8] sm:$0xff]
        %v299 = vld [vmem:[%s237 + $0xd0] sm:$0xff]
        %v300 = vld [vmem:[%s237 + $0xd8] sm:$0xff]
        %v301 = vld [vmem:[%s237 + $0xe0] sm:$0xff]
        %v302 = vld [vmem:[%s237 + $0xe8] sm:$0xff]
        %v303 = vld [vmem:[%s237 + $0xf0] sm:$0xff]
        %v304 = vld [vmem:[%s237 + $0xf8] sm:$0xff]
        %v305 = vld [vmem:[%s237 + $0x100] sm:$0xff]
        %v306 = vld [vmem:[%s237 + $0x108] sm:$0xff]
        %v307 = vld [vmem:[%s237 + $0x110] sm:$0xff]
        %v308 = vld [vmem:[%s237 + $0x118] sm:$0xff]
        %v309 = vld [vmem:[%s237 + $0x120] sm:$0xff]
        %v310 = vld [vmem:[%s237 + $0x128] sm:$0xff]
        %v311 = vld [vmem:[%s237 + $0x130] sm:$0xff]
        %v312 = vld [vmem:[%s237 + $0x138] sm:$0xff]
        %v313 = vld [vmem:[%s237 + $0x140] sm:$0xff]
        %v314 = vld [vmem:[%s237 + $0x148] sm:$0xff]
        %v315 = vld [vmem:[%s237 + $0x150] sm:$0xff]
        %v316 = vld [vmem:[%s237 + $0x158] sm:$0xff]
        %v317 = vld [vmem:[%s237 + $0x160] sm:$0xff]
        %v318 = vld [vmem:[%s237 + $0x168] sm:$0xff]
        %v319 = vld [vmem:[%s237 + $0x170] sm:$0xff]
        %v320 = vld [vmem:[%s237 + $0x178] sm:$0xff]
        %v321 = vld [vmem:[%s237 + $0x180] sm:$0xff]
        %v322 = vld [vmem:[%s237 + $0x188] sm:$0xff]
        %v323 = vld [vmem:[%s237 + $0x190] sm:$0xff]
        %v324 = vld [vmem:[%s237 + $0x198] sm:$0xff]
        %v325 = vld [vmem:[%s237 + $0x1a0] sm:$0xff]
        %v326 = vld [vmem:[%s237 + $0x1a8] sm:$0xff]
        %v327 = vld [vmem:[%s237 + $0x1b0] sm:$0xff]
        %v328 = vld [vmem:[%s237 + $0x1b8] sm:$0xff]
        %v329 = vld [vmem:[#allocation5] sm:$0xff]
        %v330 = vld [vmem:[#allocation5 + $0x8] sm:$0xff]
        %v331 = vld [vmem:[#allocation5 + $0x10] sm:$0xff]
        %v332 = vld [vmem:[#allocation5 + $0x18] sm:$0xff]
        %v333 = vld [vmem:[#allocation5 + $0x20] sm:$0xff]
        %v334 = vld [vmem:[#allocation5 + $0x28] sm:$0xff]
        %v335 = vld [vmem:[#allocation5 + $0x30] sm:$0xff]
        %v336 = vld [vmem:[#allocation5 + $0x38] sm:$0xff]
        %v337 = vld [vmem:[#allocation5 + $0x40] sm:$0xff]
        %v338 = vld [vmem:[#allocation5 + $0x48] sm:$0xff]
        %v339 = vld [vmem:[#allocation5 + $0x50] sm:$0xff]
        %v340 = vld [vmem:[#allocation5 + $0x58] sm:$0xff]
        %v341 = vld [vmem:[#allocation5 + $0x60] sm:$0xff]
        %v342 = vld [vmem:[#allocation5 + $0x68] sm:$0xff]
        %v343 = vld [vmem:[#allocation5 + $0x70] sm:$0xff]
        %v344 = vld [vmem:[#allocation5 + $0x78] sm:$0xff]
        %v345 = vld [vmem:[%s2] sm:$0x1]
        %v347 = vlaneseq
        %v348 = vshrl.u32 %v347, 7
        %v349 = vsub.s32 0, %v348
        %v350 = vrot.slane %v345, %v349
        %352 = vmatprep.subr.mxu0 0.0
        %353 = vmatpush1.msra.mxu0 %v344
        %354 = vmatprep.subr.mxu0 0.0
        %355 = vmatpush1.msra.mxu0 %v343
        %356 = vmatprep.subr.mxu0 0.0
        %357 = vmatpush1.msra.mxu0 %v342
        %358 = vmatprep.subr.mxu0 0.0
        %359 = vmatpush1.msra.mxu0 %v341
        %360 = vmatprep.subr.mxu0 0.0
        %361 = vmatpush1.msra.mxu0 %v340
        %362 = vmatprep.subr.mxu0 0.0
        %363 = vmatpush1.msra.mxu0 %v339
        %364 = vmatprep.subr.mxu0 0.0
        %365 = vmatpush1.msra.mxu0 %v338
        %366 = vmatprep.subr.mxu0 0.0
        %367 = vmatpush1.msra.mxu0 %v337
        %368 = vmatprep.subr.mxu0 0.0
        %369 = vmatpush1.msra.mxu0 %v336
        %370 = vmatprep.subr.mxu0 0.0
        %371 = vmatpush1.msra.mxu0 %v335
        %372 = vmatprep.subr.mxu0 0.0
        %373 = vmatpush1.msra.mxu0 %v334
        %374 = vmatprep.subr.mxu0 0.0
        %375 = vmatpush1.msra.mxu0 %v333
        %376 = vmatprep.subr.mxu0 0.0
        %377 = vmatpush1.msra.mxu0 %v332
        %378 = vmatprep.subr.mxu0 0.0
        %379 = vmatpush1.msra.mxu0 %v331
        %380 = vmatprep.subr.mxu0 0.0
        %381 = vmatpush1.msra.mxu0 %v330
        %382 = vmatprep.subr.mxu0 0.0
        %383 = vmatpush1.msra.mxu0 %v329
        %384 = vmatprep.subr.mxu0 0.0
        %385 = vmatpush2.msra.mxu0 0.0
        %386 = vmatprep.subr.mxu0 0.0
        %387 = vmatpush2.msra.mxu0 0.0
        %388 = vmatprep.subr.mxu0 0.0
        %389 = vmatpush2.msra.mxu0 0.0
        %390 = vmatprep.subr.mxu0 0.0
        %391 = vmatpush2.msra.mxu0 0.0
        %392 = vmatprep.subr.mxu0 0.0
        %393 = vmatpush2.msra.mxu0 0.0
        %394 = vmatprep.subr.mxu0 0.0
        %395 = vmatpush2.msra.mxu0 0.0
        %396 = vmatprep.subr.mxu0 0.0
        %397 = vmatpush2.msra.mxu0 0.0
        %398 = vmatprep.subr.mxu0 0.0
        %399 = vmatpush2.msra.mxu0 0.0
        %400 = vmatprep.subr.mxu0 0.0
        %401 = vmatpush2.msra.mxu0 0.0
        %402 = vmatprep.subr.mxu0 0.0
        %403 = vmatpush2.msra.mxu0 0.0
        %404 = vmatprep.subr.mxu0 0.0
        %405 = vmatpush2.msra.mxu0 0.0
        %406 = vmatprep.subr.mxu0 0.0
        %407 = vmatpush2.msra.mxu0 0.0
        %408 = vmatprep.subr.mxu0 0.0
        %409 = vmatpush2.msra.mxu0 0.0
        %410 = vmatprep.subr.mxu0 0.0
        %411 = vmatpush2.msra.mxu0 0.0
        %412 = vmatprep.subr.mxu0 0.0
        %413 = vmatpush2.msra.mxu0 0.0
        %414 = vmatprep.subr.mxu0 0.0
        %415 = vmatpush2.msra.mxu0 0.0
        %416 = vmatprep.mubr.f32.mxu0 0.0
        %417 = vmatmul.mubr.f32.gmra.mxu0 %v273
        %v418 = vpop.f32.mrf.mxu0
        %v419 = vadd.f32 %v350, %v418
        %v420 = vpop.f32.mrf.mxu0
        %421 = vmatprep.mubr.f32.mxu0 0.0
        %422 = vmatmul.mubr.f32.gmra.mxu0 %v274
        %v423 = vpop.f32.mrf.mxu0
        %v424 = vadd.f32 %v350, %v423
        %v425 = vpop.f32.mrf.mxu0
        %426 = vmatprep.mubr.f32.mxu0 0.0
        %427 = vmatmul.mubr.f32.gmra.mxu0 %v275
        %v428 = vpop.f32.mrf.mxu0
        %v429 = vadd.f32 %v350, %v428
        %v430 = vpop.f32.mrf.mxu0
        %431 = vmatprep.mubr.f32.mxu0 0.0
        %432 = vmatmul.mubr.f32.gmra.mxu0 %v276
        %v433 = vpop.f32.mrf.mxu0
        %v434 = vadd.f32 %v350, %v433
        %v435 = vpop.f32.mrf.mxu0
        %436 = vmatprep.mubr.f32.mxu0 0.0
        %437 = vmatmul.mubr.f32.gmra.mxu0 %v277
        %v438 = vpop.f32.mrf.mxu0
        %v439 = vadd.f32 %v350, %v438
        %v440 = vpop.f32.mrf.mxu0
        %441 = vmatprep.mubr.f32.mxu0 0.0
        %442 = vmatmul.mubr.f32.gmra.mxu0 %v278
        %v443 = vpop.f32.mrf.mxu0
        %v444 = vadd.f32 %v350, %v443
        %v445 = vpop.f32.mrf.mxu0
        %446 = vmatprep.mubr.f32.mxu0 0.0
        %447 = vmatmul.mubr.f32.gmra.mxu0 %v279
        %v448 = vpop.f32.mrf.mxu0
        %v449 = vadd.f32 %v350, %v448
        %v450 = vpop.f32.mrf.mxu0
        %451 = vmatprep.mubr.f32.mxu0 0.0
        %452 = vmatmul.mubr.f32.gmra.mxu0 %v280
        %v453 = vpop.f32.mrf.mxu0
        %v454 = vadd.f32 %v350, %v453
        %v455 = vpop.f32.mrf.mxu0
        %456 = vmatprep.mubr.f32.mxu0 0.0
        %457 = vmatmul.mubr.f32.gmra.mxu0 %v281
        %v458 = vpop.f32.mrf.mxu0
        %v459 = vadd.f32 %v350, %v458
        %v460 = vpop.f32.mrf.mxu0
        %461 = vmatprep.mubr.f32.mxu0 0.0
        %462 = vmatmul.mubr.f32.gmra.mxu0 %v282
        %v463 = vpop.f32.mrf.mxu0
        %v464 = vadd.f32 %v350, %v463
        %v465 = vpop.f32.mrf.mxu0
        %466 = vmatprep.mubr.f32.mxu0 0.0
        %467 = vmatmul.mubr.f32.gmra.mxu0 %v283
        %v468 = vpop.f32.mrf.mxu0
        %v469 = vadd.f32 %v350, %v468
        %v470 = vpop.f32.mrf.mxu0
        %471 = vmatprep.mubr.f32.mxu0 0.0
        %472 = vmatmul.mubr.f32.gmra.mxu0 %v284
        %v473 = vpop.f32.mrf.mxu0
        %v474 = vadd.f32 %v350, %v473
        %v475 = vpop.f32.mrf.mxu0
        %476 = vmatprep.mubr.f32.mxu0 0.0
        %477 = vmatmul.mubr.f32.gmra.mxu0 %v285
        %v478 = vpop.f32.mrf.mxu0
        %v479 = vadd.f32 %v350, %v478
        %v480 = vpop.f32.mrf.mxu0
        %481 = vmatprep.mubr.f32.mxu0 0.0
        %482 = vmatmul.mubr.f32.gmra.mxu0 %v286
        %v483 = vpop.f32.mrf.mxu0
        %v484 = vadd.f32 %v350, %v483
        %v485 = vpop.f32.mrf.mxu0
        %486 = vmatprep.mubr.f32.mxu0 0.0
        %487 = vmatmul.mubr.f32.gmra.mxu0 %v287
        %v488 = vpop.f32.mrf.mxu0
        %v489 = vadd.f32 %v350, %v488
        %v490 = vpop.f32.mrf.mxu0
        %491 = vmatprep.mubr.f32.mxu0 0.0
        %492 = vmatmul.mubr.f32.gmra.mxu0 %v288
        %v493 = vpop.f32.mrf.mxu0
        %v494 = vadd.f32 %v350, %v493
        %v495 = vpop.f32.mrf.mxu0
        %496 = vmatprep.mubr.f32.mxu0 0.0
        %497 = vmatmul.mubr.f32.gmra.mxu0 %v289
        %v498 = vpop.f32.mrf.mxu0
        %v499 = vadd.f32 %v350, %v498
        %v500 = vpop.f32.mrf.mxu0
        %501 = vmatprep.mubr.f32.mxu0 0.0
        %502 = vmatmul.mubr.f32.gmra.mxu0 %v290
        %v503 = vpop.f32.mrf.mxu0
        %v504 = vadd.f32 %v350, %v503
        %v505 = vpop.f32.mrf.mxu0
        %506 = vmatprep.mubr.f32.mxu0 0.0
        %507 = vmatmul.mubr.f32.gmra.mxu0 %v291
        %v508 = vpop.f32.mrf.mxu0
        %v509 = vadd.f32 %v350, %v508
        %v510 = vpop.f32.mrf.mxu0
        %511 = vmatprep.mubr.f32.mxu0 0.0
        %512 = vmatmul.mubr.f32.gmra.mxu0 %v292
        %v513 = vpop.f32.mrf.mxu0
        %v514 = vadd.f32 %v350, %v513
        %v515 = vpop.f32.mrf.mxu0
        %516 = vmatprep.mubr.f32.mxu0 0.0
        %517 = vmatmul.mubr.f32.gmra.mxu0 %v293
        %v518 = vpop.f32.mrf.mxu0
        %v519 = vadd.f32 %v350, %v518
        %v520 = vpop.f32.mrf.mxu0
        %521 = vmatprep.mubr.f32.mxu0 0.0
        %522 = vmatmul.mubr.f32.gmra.mxu0 %v294
        %v523 = vpop.f32.mrf.mxu0
        %v524 = vadd.f32 %v350, %v523
        %v525 = vpop.f32.mrf.mxu0
        %526 = vmatprep.mubr.f32.mxu0 0.0
        %527 = vmatmul.mubr.f32.gmra.mxu0 %v295
        %v528 = vpop.f32.mrf.mxu0
        %v529 = vadd.f32 %v350, %v528
        %v530 = vpop.f32.mrf.mxu0
        %531 = vmatprep.mubr.f32.mxu0 0.0
        %532 = vmatmul.mubr.f32.gmra.mxu0 %v296
        %v533 = vpop.f32.mrf.mxu0
        %v534 = vadd.f32 %v350, %v533
        %v535 = vpop.f32.mrf.mxu0
        %536 = vmatprep.mubr.f32.mxu0 0.0
        %537 = vmatmul.mubr.f32.gmra.mxu0 %v297
        %v538 = vpop.f32.mrf.mxu0
        %v539 = vadd.f32 %v350, %v538
        %v540 = vpop.f32.mrf.mxu0
        %541 = vmatprep.mubr.f32.mxu0 0.0
        %542 = vmatmul.mubr.f32.gmra.mxu0 %v298
        %v543 = vpop.f32.mrf.mxu0
        %v544 = vadd.f32 %v350, %v543
        %v545 = vpop.f32.mrf.mxu0
        %546 = vmatprep.mubr.f32.mxu0 0.0
        %547 = vmatmul.mubr.f32.gmra.mxu0 %v299
        %v548 = vpop.f32.mrf.mxu0
        %v549 = vadd.f32 %v350, %v548
        %v550 = vpop.f32.mrf.mxu0
        %551 = vmatprep.mubr.f32.mxu0 0.0
        %552 = vmatmul.mubr.f32.gmra.mxu0 %v300
        %v553 = vpop.f32.mrf.mxu0
        %v554 = vadd.f32 %v350, %v553
        %v555 = vpop.f32.mrf.mxu0
        %556 = vmatprep.mubr.f32.mxu0 0.0
        %557 = vmatmul.mubr.f32.gmra.mxu0 %v301
        %v558 = vpop.f32.mrf.mxu0
        %v559 = vadd.f32 %v350, %v558
        %v560 = vpop.f32.mrf.mxu0
        %561 = vmatprep.mubr.f32.mxu0 0.0
        %562 = vmatmul.mubr.f32.gmra.mxu0 %v302
        %v563 = vpop.f32.mrf.mxu0
        %v564 = vadd.f32 %v350, %v563
        %v565 = vpop.f32.mrf.mxu0
        %566 = vmatprep.mubr.f32.mxu0 0.0
        %567 = vmatmul.mubr.f32.gmra.mxu0 %v303
        %v568 = vpop.f32.mrf.mxu0
        %v569 = vadd.f32 %v350, %v568
        %v570 = vpop.f32.mrf.mxu0
        %571 = vmatprep.mubr.f32.mxu0 0.0
        %572 = vmatmul.mubr.f32.gmra.mxu0 %v304
        %v573 = vpop.f32.mrf.mxu0
        %v574 = vadd.f32 %v350, %v573
        %v575 = vpop.f32.mrf.mxu0
        %576 = vmatprep.mubr.f32.mxu0 0.0
        %577 = vmatmul.mubr.f32.gmra.mxu0 %v305
        %v578 = vpop.f32.mrf.mxu0
        %v579 = vadd.f32 %v350, %v578
        %v580 = vpop.f32.mrf.mxu0
        %581 = vmatprep.mubr.f32.mxu0 0.0
        %582 = vmatmul.mubr.f32.gmra.mxu0 %v306
        %v583 = vpop.f32.mrf.mxu0
        %v584 = vadd.f32 %v350, %v583
        %v585 = vpop.f32.mrf.mxu0
        %586 = vmatprep.mubr.f32.mxu0 0.0
        %587 = vmatmul.mubr.f32.gmra.mxu0 %v307
        %v588 = vpop.f32.mrf.mxu0
        %v589 = vadd.f32 %v350, %v588
        %v590 = vpop.f32.mrf.mxu0
        %591 = vmatprep.mubr.f32.mxu0 0.0
        %592 = vmatmul.mubr.f32.gmra.mxu0 %v308
        %v593 = vpop.f32.mrf.mxu0
        %v594 = vadd.f32 %v350, %v593
        %v595 = vpop.f32.mrf.mxu0
        %596 = vmatprep.mubr.f32.mxu0 0.0
        %597 = vmatmul.mubr.f32.gmra.mxu0 %v309
        %v598 = vpop.f32.mrf.mxu0
        %v599 = vadd.f32 %v350, %v598
        %v600 = vpop.f32.mrf.mxu0
        %601 = vmatprep.mubr.f32.mxu0 0.0
        %602 = vmatmul.mubr.f32.gmra.mxu0 %v310
        %v603 = vpop.f32.mrf.mxu0
        %v604 = vadd.f32 %v350, %v603
        %v605 = vpop.f32.mrf.mxu0
        %606 = vmatprep.mubr.f32.mxu0 0.0
        %607 = vmatmul.mubr.f32.gmra.mxu0 %v311
        %v608 = vpop.f32.mrf.mxu0
        %v609 = vadd.f32 %v350, %v608
        %v610 = vpop.f32.mrf.mxu0
        %611 = vmatprep.mubr.f32.mxu0 0.0
        %612 = vmatmul.mubr.f32.gmra.mxu0 %v312
        %v613 = vpop.f32.mrf.mxu0
        %v614 = vadd.f32 %v350, %v613
        %v615 = vpop.f32.mrf.mxu0
        %616 = vmatprep.mubr.f32.mxu0 0.0
        %617 = vmatmul.mubr.f32.gmra.mxu0 %v313
        %v618 = vpop.f32.mrf.mxu0
        %v619 = vadd.f32 %v350, %v618
        %v620 = vpop.f32.mrf.mxu0
        %621 = vmatprep.mubr.f32.mxu0 0.0
        %622 = vmatmul.mubr.f32.gmra.mxu0 %v314
        %v623 = vpop.f32.mrf.mxu0
        %v624 = vadd.f32 %v350, %v623
        %v625 = vpop.f32.mrf.mxu0
        %626 = vmatprep.mubr.f32.mxu0 0.0
        %627 = vmatmul.mubr.f32.gmra.mxu0 %v315
        %v628 = vpop.f32.mrf.mxu0
        %v629 = vadd.f32 %v350, %v628
        %v630 = vpop.f32.mrf.mxu0
        %631 = vmatprep.mubr.f32.mxu0 0.0
        %632 = vmatmul.mubr.f32.gmra.mxu0 %v316
        %v633 = vpop.f32.mrf.mxu0
        %v634 = vadd.f32 %v350, %v633
        %v635 = vpop.f32.mrf.mxu0
        %636 = vmatprep.mubr.f32.mxu0 0.0
        %637 = vmatmul.mubr.f32.gmra.mxu0 %v317
        %v638 = vpop.f32.mrf.mxu0
        %v639 = vadd.f32 %v350, %v638
        %v640 = vpop.f32.mrf.mxu0
        %641 = vmatprep.mubr.f32.mxu0 0.0
        %642 = vmatmul.mubr.f32.gmra.mxu0 %v318
        %v643 = vpop.f32.mrf.mxu0
        %v644 = vadd.f32 %v350, %v643
        %v645 = vpop.f32.mrf.mxu0
        %646 = vmatprep.mubr.f32.mxu0 0.0
        %647 = vmatmul.mubr.f32.gmra.mxu0 %v319
        %v648 = vpop.f32.mrf.mxu0
        %v649 = vadd.f32 %v350, %v648
        %v650 = vpop.f32.mrf.mxu0
        %651 = vmatprep.mubr.f32.mxu0 0.0
        %652 = vmatmul.mubr.f32.gmra.mxu0 %v320
        %v653 = vpop.f32.mrf.mxu0
        %v654 = vadd.f32 %v350, %v653
        %v655 = vpop.f32.mrf.mxu0
        %656 = vmatprep.mubr.f32.mxu0 0.0
        %657 = vmatmul.mubr.f32.gmra.mxu0 %v321
        %v658 = vpop.f32.mrf.mxu0
        %v659 = vadd.f32 %v350, %v658
        %v660 = vpop.f32.mrf.mxu0
        %661 = vmatprep.mubr.f32.mxu0 0.0
        %662 = vmatmul.mubr.f32.gmra.mxu0 %v322
        %v663 = vpop.f32.mrf.mxu0
        %v664 = vadd.f32 %v350, %v663
        %v665 = vpop.f32.mrf.mxu0
        %666 = vmatprep.mubr.f32.mxu0 0.0
        %667 = vmatmul.mubr.f32.gmra.mxu0 %v323
        %v668 = vpop.f32.mrf.mxu0
        %v669 = vadd.f32 %v350, %v668
        %v670 = vpop.f32.mrf.mxu0
        %671 = vmatprep.mubr.f32.mxu0 0.0
        %672 = vmatmul.mubr.f32.gmra.mxu0 %v324
        %v673 = vpop.f32.mrf.mxu0
        %v674 = vadd.f32 %v350, %v673
        %v675 = vpop.f32.mrf.mxu0
        %676 = vmatprep.mubr.f32.mxu0 0.0
        %677 = vmatmul.mubr.f32.gmra.mxu0 %v325
        %v678 = vpop.f32.mrf.mxu0
        %v679 = vadd.f32 %v350, %v678
        %v680 = vpop.f32.mrf.mxu0
        %681 = vmatprep.mubr.f32.mxu0 0.0
        %682 = vmatmul.mubr.f32.gmra.mxu0 %v326
        %v683 = vpop.f32.mrf.mxu0
        %v684 = vadd.f32 %v350, %v683
        %v685 = vpop.f32.mrf.mxu0
        %686 = vmatprep.mubr.f32.mxu0 0.0
        %687 = vmatmul.mubr.f32.gmra.mxu0 %v327
        %v688 = vpop.f32.mrf.mxu0
        %v689 = vadd.f32 %v350, %v688
        %v690 = vpop.f32.mrf.mxu0
        %691 = vmatprep.mubr.f32.mxu0 0.0
        %692 = vmatmul.mubr.f32.gmra.mxu0 %v328
        %v693 = vpop.f32.mrf.mxu0
        %v694 = vadd.f32 %v350, %v693
        %v695 = vpop.f32.mrf.mxu0
        %696 = vdwg.mxu0
        %v697 = vmax.f32 %v419, 0.0
        %v698 = vmax.f32 %v424, 0.0
        %v699 = vmax.f32 %v429, 0.0
        %v700 = vmax.f32 %v434, 0.0
        %v701 = vmax.f32 %v439, 0.0
        %v702 = vmax.f32 %v444, 0.0
        %v703 = vmax.f32 %v449, 0.0
        %v704 = vmax.f32 %v454, 0.0
        %v705 = vmax.f32 %v459, 0.0
        %v706 = vmax.f32 %v464, 0.0
        %v707 = vmax.f32 %v469, 0.0
        %v708 = vmax.f32 %v474, 0.0
        %v709 = vmax.f32 %v479, 0.0
        %v710 = vmax.f32 %v484, 0.0
        %v711 = vmax.f32 %v489, 0.0
        %v712 = vmax.f32 %v494, 0.0
        %v713 = vmax.f32 %v499, 0.0
        %v714 = vmax.f32 %v504, 0.0
        %v715 = vmax.f32 %v509, 0.0
        %v716 = vmax.f32 %v514, 0.0
        %v717 = vmax.f32 %v519, 0.0
        %v718 = vmax.f32 %v524, 0.0
        %v719 = vmax.f32 %v529, 0.0
        %v720 = vmax.f32 %v534, 0.0
        %v721 = vmax.f32 %v539, 0.0
        %v722 = vmax.f32 %v544, 0.0
        %v723 = vmax.f32 %v549, 0.0
        %v724 = vmax.f32 %v554, 0.0
        %v725 = vmax.f32 %v559, 0.0
        %v726 = vmax.f32 %v564, 0.0
        %v727 = vmax.f32 %v569, 0.0
        %v728 = vmax.f32 %v574, 0.0
        %v729 = vmax.f32 %v579, 0.0
        %v730 = vmax.f32 %v584, 0.0
        %v731 = vmax.f32 %v589, 0.0
        %v732 = vmax.f32 %v594, 0.0
        %v733 = vmax.f32 %v599, 0.0
        %v734 = vmax.f32 %v604, 0.0
        %v735 = vmax.f32 %v609, 0.0
        %v736 = vmax.f32 %v614, 0.0
        %v737 = vmax.f32 %v619, 0.0
        %v738 = vmax.f32 %v624, 0.0
        %v739 = vmax.f32 %v629, 0.0
        %v740 = vmax.f32 %v634, 0.0
        %v741 = vmax.f32 %v639, 0.0
        %v742 = vmax.f32 %v644, 0.0
        %v743 = vmax.f32 %v649, 0.0
        %v744 = vmax.f32 %v654, 0.0
        %v745 = vmax.f32 %v659, 0.0
        %v746 = vmax.f32 %v664, 0.0
        %v747 = vmax.f32 %v669, 0.0
        %v748 = vmax.f32 %v674, 0.0
        %v749 = vmax.f32 %v679, 0.0
        %v750 = vmax.f32 %v684, 0.0
        %v751 = vmax.f32 %v689, 0.0
        %v752 = vmax.f32 %v694, 0.0
        %v753 = vlaneseq
        %v754 = vshrl.u32 %v753, 7
        %v755 = vadd.s32 %v754, 8
        %v756 = vadd.s32 %v754, 16
        %v757 = vadd.s32 %v754, 24
        %v758 = vadd.s32 %v754, 32
        %v759 = vadd.s32 %v754, 40
        %v760 = vadd.s32 %v754, 48
        %vm761 = vcmp.lt.s32.totalorder %v754, 49
        %vm762 = vcmp.lt.s32.totalorder %v755, 49
        %vm763 = vcmp.lt.s32.totalorder %v756, 49
        %vm764 = vcmp.lt.s32.totalorder %v757, 49
        %vm765 = vcmp.lt.s32.totalorder %v758, 49
        %vm766 = vcmp.lt.s32.totalorder %v759, 49
        %vm767 = vcmp.lt.s32.totalorder %v760, 49
        %v768 = vsel %vm761, %v697, 0.0
        %v769 = vsel %vm762, %v698, 0.0
        %v770 = vsel %vm763, %v699, 0.0
        %v771 = vsel %vm764, %v700, 0.0
        %v772 = vsel %vm765, %v701, 0.0
        %v773 = vsel %vm766, %v702, 0.0
        %v774 = vsel %vm767, %v703, 0.0
        %v775 = vsel %vm761, %v704, 0.0
        %v776 = vsel %vm762, %v705, 0.0
        %v777 = vsel %vm763, %v706, 0.0
        %v778 = vsel %vm764, %v707, 0.0
        %v779 = vsel %vm765, %v708, 0.0
        %v780 = vsel %vm766, %v709, 0.0
        %v781 = vsel %vm767, %v710, 0.0
        %v782 = vsel %vm761, %v711, 0.0
        %v783 = vsel %vm762, %v712, 0.0
        %v784 = vsel %vm763, %v713, 0.0
        %v785 = vsel %vm764, %v714, 0.0
        %v786 = vsel %vm765, %v715, 0.0
        %v787 = vsel %vm766, %v716, 0.0
        %v788 = vsel %vm767, %v717, 0.0
        %v789 = vsel %vm761, %v718, 0.0
        %v790 = vsel %vm762, %v719, 0.0
        %v791 = vsel %vm763, %v720, 0.0
        %v792 = vsel %vm764, %v721, 0.0
        %v793 = vsel %vm765, %v722, 0.0
        %v794 = vsel %vm766, %v723, 0.0
        %v795 = vsel %vm767, %v724, 0.0
        %v796 = vsel %vm761, %v725, 0.0
        %v797 = vsel %vm762, %v726, 0.0
        %v798 = vsel %vm763, %v727, 0.0
        %v799 = vsel %vm764, %v728, 0.0
        %v800 = vsel %vm765, %v729, 0.0
        %v801 = vsel %vm766, %v730, 0.0
        %v802 = vsel %vm767, %v731, 0.0
        %v803 = vsel %vm761, %v732, 0.0
        %v804 = vsel %vm762, %v733, 0.0
        %v805 = vsel %vm763, %v734, 0.0
        %v806 = vsel %vm764, %v735, 0.0
        %v807 = vsel %vm765, %v736, 0.0
        %v808 = vsel %vm766, %v737, 0.0
        %v809 = vsel %vm767, %v738, 0.0
        %v810 = vsel %vm761, %v739, 0.0
        %v811 = vsel %vm762, %v740, 0.0
        %v812 = vsel %vm763, %v741, 0.0
        %v813 = vsel %vm764, %v742, 0.0
        %v814 = vsel %vm765, %v743, 0.0
        %v815 = vsel %vm766, %v744, 0.0
        %v816 = vsel %vm767, %v745, 0.0
        %v817 = vsel %vm761, %v746, 0.0
        %v818 = vsel %vm762, %v747, 0.0
        %v819 = vsel %vm763, %v748, 0.0
        %v820 = vsel %vm764, %v749, 0.0
        %v821 = vsel %vm765, %v750, 0.0
        %v822 = vsel %vm766, %v751, 0.0
        %v823 = vsel %vm767, %v752, 0.0
        %v824 = vadd.f32 %v768, %v769
        %v825 = vadd.f32 %v824, %v770
        %v826 = vadd.f32 %v825, %v771
        %v827 = vadd.f32 %v826, %v772
        %v828 = vadd.f32 %v827, %v773
        %v829 = vadd.f32 %v828, %v774
        %v830 = vrot.slane %v829, 4
        %v831 = vadd.f32 %v829, %v830
        %v832 = vrot.slane %v831, 2
        %v833 = vadd.f32 %v831, %v832
        %v834 = vrot.slane %v833, 1
        %v835 = vadd.f32 %v833, %v834
        %v836 = vadd.f32 %v775, %v776
        %v837 = vadd.f32 %v836, %v777
        %v838 = vadd.f32 %v837, %v778
        %v839 = vadd.f32 %v838, %v779
        %v840 = vadd.f32 %v839, %v780
        %v841 = vadd.f32 %v840, %v781
        %v842 = vrot.slane %v841, 4
        %v843 = vadd.f32 %v841, %v842
        %v844 = vrot.slane %v843, 2
        %v845 = vadd.f32 %v843, %v844
        %v846 = vrot.slane %v845, 1
        %v847 = vadd.f32 %v845, %v846
        %v848 = vadd.f32 %v782, %v783
        %v849 = vadd.f32 %v848, %v784
        %v850 = vadd.f32 %v849, %v785
        %v851 = vadd.f32 %v850, %v786
        %v852 = vadd.f32 %v851, %v787
        %v853 = vadd.f32 %v852, %v788
        %v854 = vrot.slane %v853, 4
        %v855 = vadd.f32 %v853, %v854
        %v856 = vrot.slane %v855, 2
        %v857 = vadd.f32 %v855, %v856
        %v858 = vrot.slane %v857, 1
        %v859 = vadd.f32 %v857, %v858
        %v860 = vadd.f32 %v789, %v790
        %v861 = vadd.f32 %v860, %v791
        %v862 = vadd.f32 %v861, %v792
        %v863 = vadd.f32 %v862, %v793
        %v864 = vadd.f32 %v863, %v794
        %v865 = vadd.f32 %v864, %v795
        %v866 = vrot.slane %v865, 4
        %v867 = vadd.f32 %v865, %v866
        %v868 = vrot.slane %v867, 2
        %v869 = vadd.f32 %v867, %v868
        %v870 = vrot.slane %v869, 1
        %v871 = vadd.f32 %v869, %v870
        %v872 = vadd.f32 %v796, %v797
        %v873 = vadd.f32 %v872, %v798
        %v874 = vadd.f32 %v873, %v799
        %v875 = vadd.f32 %v874, %v800
        %v876 = vadd.f32 %v875, %v801
        %v877 = vadd.f32 %v876, %v802
        %v878 = vrot.slane %v877, 4
        %v879 = vadd.f32 %v877, %v878
        %v880 = vrot.slane %v879, 2
        %v881 = vadd.f32 %v879, %v880
        %v882 = vrot.slane %v881, 1
        %v883 = vadd.f32 %v881, %v882
        %v884 = vadd.f32 %v803, %v804
        %v885 = vadd.f32 %v884, %v805
        %v886 = vadd.f32 %v885, %v806
        %v887 = vadd.f32 %v886, %v807
        %v888 = vadd.f32 %v887, %v808
        %v889 = vadd.f32 %v888, %v809
        %v890 = vrot.slane %v889, 4
        %v891 = vadd.f32 %v889, %v890
        %v892 = vrot.slane %v891, 2
        %v893 = vadd.f32 %v891, %v892
        %v894 = vrot.slane %v893, 1
        %v895 = vadd.f32 %v893, %v894
        %v896 = vadd.f32 %v810, %v811
        %v897 = vadd.f32 %v896, %v812
        %v898 = vadd.f32 %v897, %v813
        %v899 = vadd.f32 %v898, %v814
        %v900 = vadd.f32 %v899, %v815
        %v901 = vadd.f32 %v900, %v816
        %v902 = vrot.slane %v901, 4
        %v903 = vadd.f32 %v901, %v902
        %v904 = vrot.slane %v903, 2
        %v905 = vadd.f32 %v903, %v904
        %v906 = vrot.slane %v905, 1
        %v907 = vadd.f32 %v905, %v906
        %v908 = vadd.f32 %v817, %v818
        %v909 = vadd.f32 %v908, %v819
        %v910 = vadd.f32 %v909, %v820
        %v911 = vadd.f32 %v910, %v821
        %v912 = vadd.f32 %v911, %v822
        %v913 = vadd.f32 %v912, %v823
        %v914 = vrot.slane %v913, 4
        %v915 = vadd.f32 %v913, %v914
        %v916 = vrot.slane %v915, 2
        %v917 = vadd.f32 %v915, %v916
        %v918 = vrot.slane %v917, 1
        %v919 = vadd.f32 %v917, %v918
        %v920 = vmul.f32 %v835, 0.020408163
        %v921 = vmul.f32 %v847, 0.020408163
        %v922 = vmul.f32 %v859, 0.020408163
        %v923 = vmul.f32 %v871, 0.020408163
        %v924 = vmul.f32 %v883, 0.020408163
        %v925 = vmul.f32 %v895, 0.020408163
        %v926 = vmul.f32 %v907, 0.020408163
        %v927 = vmul.f32 %v919, 0.020408163
        %v928 = vld [vmem:[#allocation7] sm:$0xff]
        %v929 = vld [vmem:[#allocation7 + $0x8] sm:$0xff]
        %v930 = vld [vmem:[#allocation7 + $0x10] sm:$0xff]
        %v931 = vld [vmem:[#allocation7 + $0x18] sm:$0xff]
        %v932 = vld [vmem:[#allocation7 + $0x20] sm:$0xff]
        %v933 = vld [vmem:[#allocation7 + $0x28] sm:$0xff]
        %v934 = vld [vmem:[#allocation7 + $0x30] sm:$0xff]
        %v935 = vld [vmem:[#allocation7 + $0x38] sm:$0xff]
        %v936 = vld [vmem:[#allocation7 + $0x40] sm:$0xff]
        %v937 = vld [vmem:[#allocation7 + $0x48] sm:$0xff]
        %v938 = vld [vmem:[#allocation7 + $0x50] sm:$0xff]
        %v939 = vld [vmem:[#allocation7 + $0x58] sm:$0xff]
        %v940 = vld [vmem:[#allocation7 + $0x60] sm:$0xff]
        %v941 = vld [vmem:[#allocation7 + $0x68] sm:$0xff]
        %v942 = vld [vmem:[#allocation7 + $0x70] sm:$0xff]
        %v943 = vld [vmem:[#allocation7 + $0x78] sm:$0xff]
        %v944 = vld [vmem:[%s4] sm:$0x1]
        %v946 = vlaneseq
        %v947 = vshrl.u32 %v946, 7
        %v948 = vsub.s32 0, %v947
        %v949 = vrot.slane %v944, %v948
        %vm959 = vcmask 1041409
        %v960 = vsel %vm959, %v921, %v920
        %vm961 = vcmask 1042434
        %v962 = vsel %vm961, %v922, %v960
        %vm963 = vcmask 1043459
        %v964 = vsel %vm963, %v923, %v962
        %vm965 = vcmask 1044484
        %v966 = vsel %vm965, %v924, %v964
        %vm967 = vcmask 1045509
        %v968 = vsel %vm967, %v925, %v966
        %vm969 = vcmask 1046534
        %v970 = vsel %vm969, %v926, %v968
        %vm971 = vcmask 1047559
        %v972 = vsel %vm971, %v927, %v970
        %974 = vmatprep.subr.mxu0 0.0
        %975 = vmatpush1.msra.mxu0 %v943
        %976 = vmatprep.subr.mxu0 0.0
        %977 = vmatpush1.msra.mxu0 %v942
        %978 = vmatprep.subr.mxu0 0.0
        %979 = vmatpush1.msra.mxu0 %v941
        %980 = vmatprep.subr.mxu0 0.0
        %981 = vmatpush1.msra.mxu0 %v940
        %982 = vmatprep.subr.mxu0 0.0
        %983 = vmatpush1.msra.mxu0 %v939
        %984 = vmatprep.subr.mxu0 0.0
        %985 = vmatpush1.msra.mxu0 %v938
        %986 = vmatprep.subr.mxu0 0.0
        %987 = vmatpush1.msra.mxu0 %v937
        %988 = vmatprep.subr.mxu0 0.0
        %989 = vmatpush1.msra.mxu0 %v936
        %990 = vmatprep.subr.mxu0 0.0
        %991 = vmatpush1.msra.mxu0 %v935
        %992 = vmatprep.subr.mxu0 0.0
        %993 = vmatpush1.msra.mxu0 %v934
        %994 = vmatprep.subr.mxu0 0.0
        %995 = vmatpush1.msra.mxu0 %v933
        %996 = vmatprep.subr.mxu0 0.0
        %997 = vmatpush1.msra.mxu0 %v932
        %998 = vmatprep.subr.mxu0 0.0
        %999 = vmatpush1.msra.mxu0 %v931
        %1000 = vmatprep.subr.mxu0 0.0
        %1001 = vmatpush1.msra.mxu0 %v930
        %1002 = vmatprep.subr.mxu0 0.0
        %1003 = vmatpush1.msra.mxu0 %v929
        %1004 = vmatprep.subr.mxu0 0.0
        %1005 = vmatpush1.msra.mxu0 %v928
        %1006 = vmatprep.subr.mxu0 0.0
        %1007 = vmatpush2.msra.mxu0 0.0
        %1008 = vmatprep.subr.mxu0 0.0
        %1009 = vmatpush2.msra.mxu0 0.0
        %1010 = vmatprep.subr.mxu0 0.0
        %1011 = vmatpush2.msra.mxu0 0.0
        %1012 = vmatprep.subr.mxu0 0.0
        %1013 = vmatpush2.msra.mxu0 0.0
        %1014 = vmatprep.subr.mxu0 0.0
        %1015 = vmatpush2.msra.mxu0 0.0
        %1016 = vmatprep.subr.mxu0 0.0
        %1017 = vmatpush2.msra.mxu0 0.0
        %1018 = vmatprep.subr.mxu0 0.0
        %1019 = vmatpush2.msra.mxu0 0.0
        %1020 = vmatprep.subr.mxu0 0.0
        %1021 = vmatpush2.msra.mxu0 0.0
        %1022 = vmatprep.subr.mxu0 0.0
        %1023 = vmatpush2.msra.mxu0 0.0
        %1024 = vmatprep.subr.mxu0 0.0
        %1025 = vmatpush2.msra.mxu0 0.0
        %1026 = vmatprep.subr.mxu0 0.0
        %1027 = vmatpush2.msra.mxu0 0.0
        %1028 = vmatprep.subr.mxu0 0.0
        %1029 = vmatpush2.msra.mxu0 0.0
        %1030 = vmatprep.subr.mxu0 0.0
        %1031 = vmatpush2.msra.mxu0 0.0
        %1032 = vmatprep.subr.mxu0 0.0
        %1033 = vmatpush2.msra.mxu0 0.0
        %1034 = vmatprep.subr.mxu0 0.0
        %1035 = vmatpush2.msra.mxu0 0.0
        %1036 = vmatprep.subr.mxu0 0.0
        %1037 = vmatpush2.msra.mxu0 0.0
        %1038 = vmatprep.mubr.f32.mxu0 0.0
        %1039 = vmatmul.mubr.f32.gmra.mxu0 %v972
        %v1040 = vpop.f32.mrf.mxu0
        %v1041 = vadd.f32 %v949, %v1040
        %v1042 = vpop.f32.mrf.mxu0
        %1043 = vdwg.mxu0
        %1044 = vst [vmem:[%s271] sm:$0xff] %v1041
        %s1045 = sand.u32 %s141, 1
        %s1046 = scalar_lea.sflag [#allocation4], %s1045
        %s1047 = sand.u32 %s141, 1
        %s1048 = smul.addr %s1047, 8
        %s1049 = scalar_lea.vmem [#allocation8], %s1048
        // Predicated region
        $region53: #{tpu_custom_call.1} parent=39 // pred_check
          %p1050 = pneg %p151
        $region54: #{tpu_custom_call.1} parent=39 // pred_check_branch
          %1052 = sbr.rel (%p1050) target = $region56
        $region55: #{tpu_custom_call.1} parent=39 // pred_region
          %s1054 = ssub.s32 128, 128
          %1055 = vsyncadd %s1046, %s1054
          %s1056 = smul.addr %s23, 128
          %s1057 = scalar_lea.hbm %s5, %s1056
          %s1059 = sshll.u32 %s1049, 4
          %s1060 = int_to_ptr.vmem [resolvable:$true] %s1059
          %1062 = dma.vmem_to_hbm [thread:$0]  %s1060, 128, %s1057, %s1046
        $region56: #{tpu_custom_call.1} parent=39 // pred_fallthru
          _
      $region40: #{tpu_custom_call.1} parent=5 // pred_fallthru
        _
      %p1063 = scmp.le.s32.totalorder 2, %s18
      // Predicated region
      $region57: #{tpu_custom_call.1} parent=5 // pred_check
        %p1064 = pneg %p1063
      $region58: #{tpu_custom_call.1} parent=5 // pred_check_branch
        %1066 = sbr.rel (%p1064) target = $region60
      $region59: #{tpu_custom_call.1} parent=5 // pred_region
        %s1067 = ssub.s32 %s18, 2
        // Predicated region
        $region61: #{tpu_custom_call.1} parent=59 // pred_check
          %p1068 = pneg %p157
        $region62: #{tpu_custom_call.1} parent=59 // pred_check_branch
          %1070 = sbr.rel (%p1068) target = $region64
        $region63: #{tpu_custom_call.1} parent=59 // pred_region
          %s1071 = sand.u32 %s142, 1
          %s1072 = scalar_lea.sflag [#allocation4], %s1071
          %s1073 = sand.u32 %s142, 1
          %s1074 = smul.addr %s1073, 8
          %s1075 = scalar_lea.vmem [#allocation8], %s1074
          %1076 = dma.done %s1072, 128
        $region64: #{tpu_custom_call.1} parent=59 // pred_fallthru
          _
      $region60: #{tpu_custom_call.1} parent=5 // pred_fallthru
        _
    $region6: #{tpu_custom_call.1} parent=1 // loop_footer
      %s22 = sadd.s32 1, %s18
    $region7: #{tpu_custom_call.1} parent=1 // loop_footer_branch
      %17 = sbr.rel target = $region3
    $region8: #{tpu_custom_call.1} parent=1 // loop_exit
      _
    %1077 = vsyncpa [#allocation3], 1
    %s1078 = scalar_lea.sflag [#allocation3], 1
    %1079 = vsyncpa %s1078, 1
    %1080 = vsyncpa [#allocation6], 1
    %1081 = vsyncpa [#allocation4], 1
    %s1082 = scalar_lea.sflag [#allocation4], 1
    %1083 = vsyncpa %s1082, 1

</llo_original>
